<compile_context>
chip_gen: v7x
topology: tpu7x:2x2x1
jax: 0.10.0
libtpu: 0.0.40
codegen_flags: <defaults>
</compile_context>

<pallas_src>
import functools

import jax
import jax.numpy as jnp
from jax import lax
from jax.experimental import pallas as pl
from jax.experimental.pallas import tpu as pltpu

NEG_SLOPE = 0.01   # nn.LeakyReLU default negative_slope
STD_EPS = 1e-12    # variance floor: guards std == 0 (constant obs); torch would emit inf/nan


def _round_up(x, m):
    return (x + m - 1) // m * m


def _leaky_relu(x):
    # one vmul + vmax instead of compare + select + mul
    return jnp.maximum(x, NEG_SLOPE * x)


# ---------------------------------------------------------------------------
# Pass 1: global mean / inv_std over ALL elements of obs (streamed by tile).
# ---------------------------------------------------------------------------
def _stats_kernel(obs_ref, mean_ref, inv_std_ref, s_acc, ss_acc, *, n_elems):
    i = pl.program_id(0)

    @pl.when(i == 0)
    def _():
        s_acc[...] = jnp.zeros_like(s_acc)
        ss_acc[...] = jnp.zeros_like(ss_acc)

    x = obs_ref[...].astype(jnp.float32)
    # Fused single pass: sum and sum-of-squares together; only a sublane
    # reduction per tile (cross-lane reduce deferred to the finalize step).
    s_acc[...] += jnp.sum(x, axis=0, keepdims=True)
    ss_acc[...] += jnp.sum(x * x, axis=0, keepdims=True)

    @pl.when(i == pl.num_programs(0) - 1)
    def _():
        s = jnp.sum(s_acc[...], keepdims=True)     # (1, 1)
        ss = jnp.sum(ss_acc[...], keepdims=True)   # (1, 1)
        mean = s * (1.0 / n_elems)
        # torch .std() is unbiased (N-1); one-pass variance form.
        var = (ss - n_elems * mean * mean) * (1.0 / (n_elems - 1.0))
        inv_std = lax.rsqrt(jnp.maximum(var, STD_EPS))   # EUP rsqrt, no divide
        mean_ref[...] = jnp.broadcast_to(mean, mean_ref.shape)
        inv_std_ref[...] = jnp.broadcast_to(inv_std, inv_std_ref.shape)


# ---------------------------------------------------------------------------
# Pass 2: normalize + Linear -> LeakyReLU -> Linear -> LeakyReLU -> Linear.
# ---------------------------------------------------------------------------
def _mlp_kernel(obs_ref, mean_ref, inv_std_ref,
                w1_ref, b1_ref, w2_ref, b2_ref, w3_ref, b3_ref,
                out_ref, *, compute_dtype):
    x = obs_ref[...].astype(jnp.float32)
    xn = (x - mean_ref[...]) * inv_std_ref[...]

    h = jnp.dot(xn.astype(compute_dtype), w1_ref[...],
                preferred_element_type=jnp.float32) + b1_ref[...]
    h = _leaky_relu(h)
    h = jnp.dot(h.astype(compute_dtype), w2_ref[...],
                preferred_element_type=jnp.float32) + b2_ref[...]
    h = _leaky_relu(h)
    z = jnp.dot(h.astype(compute_dtype), w3_ref[...],
                preferred_element_type=jnp.float32) + b3_ref[...]

    out_ref[...] = z.astype(out_ref.dtype)


def dnn_forward(obs, params, *, block_rows=256, use_bf16=False):
    """Pallas implementation of DNN.forward(obs). obs: [B, D] float array."""
    (w1, b1), (w2, b2), (w3, b3) = params
    B, D = obs.shape
    H1, H2, O = w1.shape[1], w2.shape[1], w3.shape[1]

    # Row tile: multiple of 8 sublanes.  Pad the batch so the grid divides
    # exactly; zero rows contribute nothing to sum / sum-of-squares and the
    # true element count is baked into the stats kernel, so stats are exact.
    tb = min(block_rows, _round_up(B, 8))
    b_pad = _round_up(B, tb)
    obs_p = obs if b_pad == B else jnp.pad(obs, ((0, b_pad - B), (0, 0)))
    num_tiles = b_pad // tb

    obs_spec = pl.BlockSpec((tb, D), lambda i: (i, 0))
    resident = lambda shape: pl.BlockSpec(shape, lambda i: (0, 0))  # stays in VMEM

    # ---- pass 1: global mean / inv_std (reduction axis => "arbitrary") ----
    mean_row, inv_std_row = pl.pallas_call(
        functools.partial(_stats_kernel, n_elems=float(B * D)),
        out_shape=(jax.ShapeDtypeStruct((1, D), jnp.float32),
                   jax.ShapeDtypeStruct((1, D), jnp.float32)),
        grid=(num_tiles,),
        in_specs=[obs_spec],
        out_specs=(resident((1, D)), resident((1, D))),
        scratch_shapes=[pltpu.VMEM((1, D), jnp.float32),
                        pltpu.VMEM((1, D), jnp.float32)],
        compiler_params=pltpu.CompilerParams(
            dimension_semantics=("arbitrary",)),
        cost_estimate=pl.CostEstimate(
            flops=3 * b_pad * D, transcendentals=1,
            bytes_accessed=b_pad * D * 4 + 2 * D * 4),
    )(obs_p)

    # ---- pass 2: batch-tiled MLP ("parallel" => megacore / 2 TCs on v7x) --
    if use_bf16:
        # v6e/v7x MXU is native bf16; halves weight bytes.  f32 accumulation.
        w1c, w2c, w3c = (w.astype(jnp.bfloat16) for w in (w1, w2, w3))
        compute_dtype = jnp.bfloat16
    else:
        w1c, w2c, w3c = w1, w2, w3
        compute_dtype = jnp.float32

    weight_bytes = sum(int(a.size) * a.dtype.itemsize
                       for a in (w1c, b1, w2c, b2, w3c, b3))
    mlp_cost = pl.CostEstimate(
        flops=2 * b_pad * (D * H1 + H1 * H2 + H2 * O),
        transcendentals=0,
        bytes_accessed=int(obs_p.size) * obs_p.dtype.itemsize
        + weight_bytes + 2 * D * 4 + b_pad * O * 4)

    out = pl.pallas_call(
        functools.partial(_mlp_kernel, compute_dtype=compute_dtype),
        out_shape=jax.ShapeDtypeStruct((b_pad, O), jnp.float32),
        grid=(num_tiles,),
        in_specs=[
            obs_spec,                                  # streamed (double-buffered)
            resident((1, D)), resident((1, D)),        # mean / inv_std
            resident(w1c.shape), resident(b1.shape),   # weights stay resident
            resident(w2c.shape), resident(b2.shape),
            resident(w3c.shape), resident(b3.shape),
        ],
        out_specs=pl.BlockSpec((tb, O), lambda i: (i, 0)),
        compiler_params=pltpu.CompilerParams(
            dimension_semantics=("parallel",)),
        cost_estimate=mlp_cost,
    )(obs_p, mean_row, inv_std_row, w1c, b1, w2c, b2, w3c, b3)

    return out[:B] if b_pad != B else out


def init_linear(key, in_dim, out_dim):
    # nn.Linear default init: U(-1/sqrt(in_dim), 1/sqrt(in_dim)).
    kw, kb = jax.random.split(key)
    bound = 1.0 / jnp.sqrt(in_dim)
    w = jax.random.uniform(kw, (in_dim, out_dim), jnp.float32, -bound, bound)
    b = jax.random.uniform(kb, (1, out_dim), jnp.float32, -bound, bound)
    return w, b


def reference_forward(obs, params):
    x = obs.astype(jnp.float32)
    xn = (x - jnp.mean(x)) / jnp.std(x, ddof=1)
    (w1, b1), (w2, b2), (w3, b3) = params
    h = _leaky_relu(xn @ w1 + b1)
    h = _leaky_relu(h @ w2 + b2)
    return h @ w3 + b3


if __name__ == "__main__":
    # DNN(input_dim=32, output_dim=16, net_arch=[64, 48]) on a batch of 200
    # observations (not a tile multiple -> exercises padding + multi-tile grid).
    input_dim, output_dim, net_arch = 32, 16, [64, 48]
    batch = 200

    key = jax.random.PRNGKey(0)
    k_obs, k1, k2, k3 = jax.random.split(key, 4)

    obs = jax.random.normal(k_obs, (batch, input_dim), jnp.float32)
    params = [
        init_linear(k1, input_dim, net_arch[0]),
        init_linear(k2, net_arch[0], net_arch[1]),
        init_linear(k3, net_arch[1], output_dim),
    ]

    z_ref = reference_forward(obs, params)

    # f32 path: matches the PyTorch module semantics tightly.
    z = dnn_forward(obs, params, block_rows=64, use_bf16=False)
    jax.block_until_ready(z)
    assert z.shape == (batch, output_dim)
    assert jnp.allclose(z, z_ref, atol=1e-4, rtol=1e-4), "f32 mismatch vs reference"

    # bf16-MXU path (v6e/v7x native matmul dtype): looser tolerance.
    z_bf16 = dnn_forward(obs, params, block_rows=64, use_bf16=True)
    jax.block_until_ready(z_bf16)
    assert jnp.allclose(z_bf16, z_ref, atol=5e-2, rtol=5e-2), "bf16 mismatch vs reference"

    print("KERNEL_OK")
</pallas_src>

<mosaic_0001>
module attributes {stable_mosaic.version = 11 : i64} {
  func.func @_stats_kernel(%arg0: i32, %arg1: memref<64x32xf32, #tpu.memory_space<vmem>>, %arg2: memref<1x32xf32, #tpu.memory_space<vmem>>, %arg3: memref<1x32xf32, #tpu.memory_space<vmem>>, %arg4: memref<1x32xf32, #tpu.memory_space<vmem>>, %arg5: memref<1x32xf32, #tpu.memory_space<vmem>>) attributes {dimension_semantics = [#tpu.dimension_semantics<arbitrary>], iteration_bounds = array<i64: 4>, scalar_prefetch = 0 : i64, scratch_operands = 2 : i64, tpu.core_type = #tpu.core_type<tc>, window_params = [{transform_indices = @transform_0, window_bounds = array<i64: 64, 32>}, {pipeline_mode = #tpu.pipeline_mode<synchronous>, transform_indices = @transform_1, window_bounds = array<i64: 1, 32>}, {pipeline_mode = #tpu.pipeline_mode<synchronous>, transform_indices = @transform_2, window_bounds = array<i64: 1, 32>}]} {
    %c0_i32 = arith.constant 0 : i32
    %0 = arith.cmpi eq, %arg0, %c0_i32 : i32
    %1 = arith.extui %0 : i1 to i32
    %c0_i32_0 = arith.constant 0 : i32
    %2 = arith.cmpi ne, %1, %c0_i32_0 : i32
    scf.if %2 {
      %cst_12 = arith.constant 0.000000e+00 : f32
      %18 = vector.broadcast %cst_12 : f32 to vector<1x32xf32>
      %c0_13 = arith.constant 0 : index
      %c0_14 = arith.constant 0 : index
      %19 = vector.load %arg4[%c0_13, %c0_14] : memref<1x32xf32, #tpu.memory_space<vmem>>, vector<1x32xf32>
      tpu.vector_store %arg4[%c0_13, %c0_14], %18 {strides = array<i32>} : memref<1x32xf32, #tpu.memory_space<vmem>>, vector<1x32xf32>,
      %cst_15 = arith.constant 0.000000e+00 : f32
      %20 = vector.broadcast %cst_15 : f32 to vector<1x32xf32>
      %c0_16 = arith.constant 0 : index
      %c0_17 = arith.constant 0 : index
      %21 = vector.load %arg5[%c0_16, %c0_17] : memref<1x32xf32, #tpu.memory_space<vmem>>, vector<1x32xf32>
      tpu.vector_store %arg5[%c0_16, %c0_17], %20 {strides = array<i32>} : memref<1x32xf32, #tpu.memory_space<vmem>>, vector<1x32xf32>,
    } else {
    }
    %c0 = arith.constant 0 : index
    %c0_1 = arith.constant 0 : index
    %3 = vector.load %arg1[%c0, %c0_1] : memref<64x32xf32, #tpu.memory_space<vmem>>, vector<64x32xf32>
    %c0_2 = arith.constant 0 : index
    %c0_3 = arith.constant 0 : index
    %4 = vector.load %arg4[%c0_2, %c0_3] : memref<1x32xf32, #tpu.memory_space<vmem>>, vector<1x32xf32>
    %cst = arith.constant dense<0.000000e+00> : vector<32xf32>
    %5 = vector.multi_reduction <add>, %3, %cst [0] : vector<64x32xf32> to vector<32xf32>
    %6 = vector.shape_cast %5 : vector<32xf32> to vector<1x32xf32>
    %7 = arith.addf %4, %6 : vector<1x32xf32>
    %c0_4 = arith.constant 0 : index
    %c0_5 = arith.constant 0 : index
    %8 = vector.load %arg4[%c0_4, %c0_5] : memref<1x32xf32, #tpu.memory_space<vmem>>, vector<1x32xf32>
    tpu.vector_store %arg4[%c0_4, %c0_5], %7 {strides = array<i32>} : memref<1x32xf32, #tpu.memory_space<vmem>>, vector<1x32xf32>,
    %c0_6 = arith.constant 0 : index
    %c0_7 = arith.constant 0 : index
    %9 = vector.load %arg5[%c0_6, %c0_7] : memref<1x32xf32, #tpu.memory_space<vmem>>, vector<1x32xf32>
    %10 = arith.mulf %3, %3 : vector<64x32xf32>
    %cst_8 = arith.constant dense<0.000000e+00> : vector<32xf32>
    %11 = vector.multi_reduction <add>, %10, %cst_8 [0] : vector<64x32xf32> to vector<32xf32>
    %12 = vector.shape_cast %11 : vector<32xf32> to vector<1x32xf32>
    %13 = arith.addf %9, %12 : vector<1x32xf32>
    %c0_9 = arith.constant 0 : index
    %c0_10 = arith.constant 0 : index
    %14 = vector.load %arg5[%c0_9, %c0_10] : memref<1x32xf32, #tpu.memory_space<vmem>>, vector<1x32xf32>
    tpu.vector_store %arg5[%c0_9, %c0_10], %13 {strides = array<i32>} : memref<1x32xf32, #tpu.memory_space<vmem>>, vector<1x32xf32>,
    %c3_i32 = arith.constant 3 : i32
    %15 = arith.cmpi eq, %arg0, %c3_i32 : i32
    %16 = arith.extui %15 : i1 to i32
    %c0_i32_11 = arith.constant 0 : i32
    %17 = arith.cmpi ne, %16, %c0_i32_11 : i32
    scf.if %17 {
      %c0_12 = arith.constant 0 : index
      %c0_13 = arith.constant 0 : index
      %18 = vector.load %arg4[%c0_12, %c0_13] : memref<1x32xf32, #tpu.memory_space<vmem>>, vector<1x32xf32>
      %19 = vector.shape_cast %18 : vector<1x32xf32> to vector<1x1x32xf32>
      %cst_14 = arith.constant dense<0.000000e+00> : vector<1xf32>
      %20 = vector.multi_reduction <add>, %19, %cst_14 [1, 2] : vector<1x1x32xf32> to vector<1xf32>
      %21 = vector.shape_cast %20 : vector<1xf32> to vector<1x1x1xf32>
      %22 = vector.extract %21[0, 0, 0] : f32 from vector<1x1x1xf32>
      %23 = vector.broadcast %22 : f32 to vector<1x1xf32>
      %c0_15 = arith.constant 0 : index
      %c0_16 = arith.constant 0 : index
      %24 = vector.load %arg5[%c0_15, %c0_16] : memref<1x32xf32, #tpu.memory_space<vmem>>, vector<1x32xf32>
      %25 = vector.shape_cast %24 : vector<1x32xf32> to vector<1x1x32xf32>
      %cst_17 = arith.constant dense<0.000000e+00> : vector<1xf32>
      %26 = vector.multi_reduction <add>, %25, %cst_17 [1, 2] : vector<1x1x32xf32> to vector<1xf32>
      %27 = vector.shape_cast %26 : vector<1xf32> to vector<1x1x1xf32>
      %28 = vector.extract %27[0, 0, 0] : f32 from vector<1x1x1xf32>
      %29 = vector.broadcast %28 : f32 to vector<1x1xf32>
      %cst_18 = arith.constant 1.562500e-04 : f32
      %30 = vector.broadcast %cst_18 : f32 to vector<1x1xf32>
      %31 = arith.mulf %23, %30 : vector<1x1xf32>
      %cst_19 = arith.constant 6.400000e+03 : f32
      %32 = vector.broadcast %cst_19 : f32 to vector<1x1xf32>
      %33 = arith.mulf %32, %31 : vector<1x1xf32>
      %34 = arith.mulf %33, %31 : vector<1x1xf32>
      %35 = arith.subf %29, %34 : vector<1x1xf32>
      %cst_20 = arith.constant 1.56274415E-4 : f32
      %36 = vector.broadcast %cst_20 : f32 to vector<1x1xf32>
      %37 = arith.mulf %35, %36 : vector<1x1xf32>
      %cst_21 = arith.constant 9.99999996E-13 : f32
      %38 = vector.broadcast %cst_21 : f32 to vector<1x1xf32>
      %39 = arith.maximumf %37, %38 : vector<1x1xf32>
      %40 = math.rsqrt %39 : vector<1x1xf32>
      %41 = vector.shape_cast %31 : vector<1x1xf32> to vector<1x1xf32>
      %42 = vector.broadcast %41 : vector<1x1xf32> to vector<1x32xf32>
      %c0_22 = arith.constant 0 : index
      %c0_23 = arith.constant 0 : index
      %43 = vector.load %arg2[%c0_22, %c0_23] : memref<1x32xf32, #tpu.memory_space<vmem>>, vector<1x32xf32>
      tpu.vector_store %arg2[%c0_22, %c0_23], %42 {strides = array<i32>} : memref<1x32xf32, #tpu.memory_space<vmem>>, vector<1x32xf32>,
      %44 = vector.shape_cast %40 : vector<1x1xf32> to vector<1x1xf32>
      %45 = vector.broadcast %44 : vector<1x1xf32> to vector<1x32xf32>
      %c0_24 = arith.constant 0 : index
      %c0_25 = arith.constant 0 : index
      %46 = vector.load %arg3[%c0_24, %c0_25] : memref<1x32xf32, #tpu.memory_space<vmem>>, vector<1x32xf32>
      tpu.vector_store %arg3[%c0_24, %c0_25], %45 {strides = array<i32>} : memref<1x32xf32, #tpu.memory_space<vmem>>, vector<1x32xf32>,
    } else {
    }
    return
  }
  func.func @transform_0(%arg0: i32) -> (i32, i32) {
    %c0_i32 = arith.constant 0 : i32
    %c0_i32_0 = arith.constant 0 : i32
    return %arg0, %c0_i32 : i32, i32
  }
  func.func @transform_1(%arg0: i32) -> (i32, i32) {
    %c0_i32 = arith.constant 0 : i32
    %c0_i32_0 = arith.constant 0 : i32
    %c0_i32_1 = arith.constant 0 : i32
    return %c0_i32, %c0_i32_0 : i32, i32
  }
  func.func @transform_2(%arg0: i32) -> (i32, i32) {
    %c0_i32 = arith.constant 0 : i32
    %c0_i32_0 = arith.constant 0 : i32
    %c0_i32_1 = arith.constant 0 : i32
    return %c0_i32, %c0_i32_0 : i32, i32
  }
}

</mosaic_0001>

<llo_original>
// kernel: tpu_custom_call.1
$region0: #{tpu_custom_call.1}
  #allocation0 [shape = 'u32[]', space=smem, size = 0x4, offset = 0x4, fixed_abs, tag = 'smem constant byte address 0x4 - core index']
  #allocation1 [shape = 'u32[144,128]{1,0:T(1,128)}', space=vmem, size = 0x12000, scoped, tag = 'internal scratch']
  #allocation2 [shape = 'f32[1,32]{1,0:T(1,128)}', space=vmem, size = 0x200, scoped, tag = 'scratch operand']
  #allocation3 [shape = 'f32[1,32]{1,0:T(1,128)}', space=vmem, size = 0x200, scoped, tag = 'scratch operand']
  %s0 = inlined_call_operand.vmem [shape: f32[256,32], index: 0, kind: input, shape index: {}]
  %s1 = inlined_call_operand.hbm [shape: f32[1,32], index: 1, kind: output, shape index: {0}]
  %s2 = inlined_call_operand.hbm [shape: f32[1,32], index: 2, kind: output, shape index: {1}]
  %3 = xla_tuple %s1, %s2
  %s4 = sld [smem:[#allocation0]]
  $region53: #{tpu_custom_call.1} parent=0
    _
  %s6 = ssub.s32 1, %s4
  %s7 = scalar_select 0, %s6, %s4
  $region1: #{tpu_custom_call.1} parent=0
    #allocation4 [shape = 'u8[512]{0}', space=vmem, size = 0x400, scoped, tag = 'output window, operand 0, single buffered']
    #allocation5 [shape = 's32[2]{0}', space=sflag, size = 0x8, scoped, tag = 'scoped memory for tpu_custom_call.1']
    #allocation6 [shape = 'u8[512]{0}', space=vmem, size = 0x400, scoped, tag = 'output window, operand 1, single buffered']
    #allocation7 [shape = 's32[1]{0}', space=sflag, size = 0x4, scoped, tag = 'scoped memory for tpu_custom_call.1']
    %8 = vsyncpa [#allocation5], 0
    %9 = vsyncpa [#allocation7], 0
    loop: start=0, step=1, limit=6
    $region2: #{tpu_custom_call.1} parent=1 // loop_pre_header
      _
    $region3: #{tpu_custom_call.1} parent=1 // loop_header
      %s11 = sphi 0, %s15
      %p12 = scmp.ge.s32.totalorder %s11, 6
      %s21 = sphi 0, %s23
      %s24 = sphi 0, %s21
      %s25 = sphi 0, %s24
      %s41 = sphi 0, %s25
      %s45 = sphi 0, %s45
      %s47 = sphi 0, %s45
      %s48 = sphi 0, %s47
      %s62 = sphi 0, %s48
      %s66 = sphi 0, %s66
      %s68 = sphi 0, %s66
      %s69 = sphi 0, %s68
      %s83 = sphi 0, %s69
    $region4: #{tpu_custom_call.1} parent=1 // loop_header_branch
      %14 = sbr.rel (%p12) target = $region8
    $region5: #{tpu_custom_call.1} parent=1 // loop_body
      %s16 = ssub.s32 %s11, 1
      %s17 = ssub.s32 %s11, 2
      %s18 = sadd.s32 %s11, 1
      %s19 = ssub.s32 %s11, %s18
      %p20 = scmp.eq.s32.totalorder %s19, 0
      %s22 = sadd.s32 %s21, 1
      %s23 = scalar_select %p20, %s21, %s22
      %p26 = pneg %p20
      %p27 = scmp.eq.s32.totalorder %s11, 3
      %p28 = por %p26, %p27
      %p29 = scmp.ne.s32.totalorder %s21, %s24
      %p30 = scmp.eq.s32.totalorder %s11, 0
      %p31 = por %p29, %p30
      %p32 = scmp.ne.s32.totalorder %s21, %s24
      %p33 = scmp.eq.s32.totalorder %s16, 3
      %p34 = por %p32, %p33
      %p35 = scmp.ne.s32.totalorder %s24, %s25
      %p36 = scmp.eq.s32.totalorder %s16, 0
      %p37 = por %p35, %p36
      %p38 = scmp.ne.s32.totalorder %s24, %s25
      %p39 = scmp.eq.s32.totalorder %s17, 3
      %p40 = por %p38, %p39
      %p42 = scmp.ne.s32.totalorder %s25, %s41
      %p43 = scmp.eq.s32.totalorder %s17, 0
      %p44 = por %p42, %p43
      %s46 = sadd.s32 %s45, 1
      %p49 = scmp.eq.s32.totalorder %s11, 3
      %p50 = scmp.ne.s32.totalorder %s45, %s47
      %p51 = scmp.eq.s32.totalorder %s11, 0
      %p52 = por %p50, %p51
      %p53 = scmp.ne.s32.totalorder %s45, %s47
      %p54 = scmp.eq.s32.totalorder %s16, 3
      %p55 = por %p53, %p54
      %p56 = scmp.ne.s32.totalorder %s47, %s48
      %p57 = scmp.eq.s32.totalorder %s16, 0
      %p58 = por %p56, %p57
      %p59 = scmp.ne.s32.totalorder %s47, %s48
      %p60 = scmp.eq.s32.totalorder %s17, 3
      %p61 = por %p59, %p60
      %p63 = scmp.ne.s32.totalorder %s48, %s62
      %p64 = scmp.eq.s32.totalorder %s17, 0
      %p65 = por %p63, %p64
      %s67 = sadd.s32 %s66, 1
      %p70 = scmp.eq.s32.totalorder %s11, 3
      %p71 = scmp.ne.s32.totalorder %s66, %s68
      %p72 = scmp.eq.s32.totalorder %s11, 0
      %p73 = por %p71, %p72
      %p74 = scmp.ne.s32.totalorder %s66, %s68
      %p75 = scmp.eq.s32.totalorder %s16, 3
      %p76 = por %p74, %p75
      %p77 = scmp.ne.s32.totalorder %s68, %s69
      %p78 = scmp.eq.s32.totalorder %s16, 0
      %p79 = por %p77, %p78
      %p80 = scmp.ne.s32.totalorder %s68, %s69
      %p81 = scmp.eq.s32.totalorder %s17, 3
      %p82 = por %p80, %p81
      %p84 = scmp.ne.s32.totalorder %s69, %s83
      %p85 = scmp.eq.s32.totalorder %s17, 0
      %p86 = por %p84, %p85
      %p87 = scmp.le.s32.totalorder 1, %s11
      %p88 = scmp.lt.s32.totalorder %s11, 5
      %p89 = pnand %p87, %p88
      %p90 = pneg %p89
      // Predicated region
      $region9: #{tpu_custom_call.1} parent=5 // pred_check
        _
      $region10: #{tpu_custom_call.1} parent=5 // pred_check_branch
        %92 = sbr.rel (%p89) target = $region12
      $region11: #{tpu_custom_call.1} parent=5 // pred_region
        %s93 = ssub.s32 %s11, 1
      $region12: #{tpu_custom_call.1} parent=5 // pred_fallthru
        _
      %p94 = scmp.lt.s32.totalorder %s11, 4
      // Predicated region
      $region13: #{tpu_custom_call.1} parent=5 // pred_check
        %p95 = pneg %p94
      $region14: #{tpu_custom_call.1} parent=5 // pred_check_branch
        %97 = sbr.rel (%p95) target = $region16
      $region15: #{tpu_custom_call.1} parent=5 // pred_region
        // Predicated region
        $region17: #{tpu_custom_call.1} parent=15 // pred_check
          %p98 = pneg %p31
        $region18: #{tpu_custom_call.1} parent=15 // pred_check_branch
          %100 = sbr.rel (%p98) target = $region20
        $region19: #{tpu_custom_call.1} parent=15 // pred_region
          %s101 = smul.u32 8, %s11
          %p102 = scmp.lt.s32.totalorder %s101, 31
          %s103 = scalar_select %p102, %s101, 31
          %s104 = smul.addr %s103, 8
          %s105 = scalar_lea.vmem %s0, %s104
          %s106 = smul.u32 8, %s11
        $region20: #{tpu_custom_call.1} parent=15 // pred_fallthru
          _
      $region16: #{tpu_custom_call.1} parent=5 // pred_fallthru
        _
      %p107 = scmp.le.s32.totalorder 1, %s11
      %p108 = scmp.lt.s32.totalorder %s11, 5
      %p109 = pnand %p107, %p108
      %p110 = pneg %p109
      // Predicated region
      $region21: #{tpu_custom_call.1} parent=5 // pred_check
        _
      $region22: #{tpu_custom_call.1} parent=5 // pred_check_branch
        %112 = sbr.rel (%p109) target = $region24
      $region23: #{tpu_custom_call.1} parent=5 // pred_region
        %s113 = ssub.s32 %s11, 1
        %s114 = smul.u32 8, %s16
        %p115 = scmp.lt.s32.totalorder %s114, 31
        %s116 = scalar_select %p115, %s114, 31
        %s117 = smul.addr %s116, 8
        %s118 = scalar_lea.vmem %s0, %s117
        %p119 = pneg %p37
        %p120 = pneg %p34
        %p121 = pneg %p58
        %p122 = pneg %p55
        %p123 = pneg %p79
        %p124 = pneg %p76
        %s125 = smul.u32 8, %s16
        %p126 = scmp.lt.s32.totalorder %s125, 31
        %s127 = scalar_select %p126, %s125, 31
        %s128 = smul.addr %s127, 8
        %s129 = scalar_lea.vmem %s0, %s128
        %s130 = smul.u32 8, %s16
        %p131 = scmp.eq.s32.totalorder %s16, 0
        // Predicated region
        $region25: #{tpu_custom_call.1} parent=23 // pred_check
          %p132 = pneg %p131
        $region26: #{tpu_custom_call.1} parent=23 // pred_check_branch
          %134 = sbr.rel (%p132) target = $region28
        $region27: #{tpu_custom_call.1} parent=23 // pred_region
          %vm135 = vcmask 253952
          %136 = vst.msk [vmem:[#allocation2] sm:$0x1] %vm135, 0.0
          %137 = vst.msk [vmem:[#allocation3] sm:$0x1] %vm135, 0.0
        $region28: #{tpu_custom_call.1} parent=23 // pred_fallthru
          _
        %v138 = vld [vmem:[%s129] sm:$0xff]
        %v139 = vld [vmem:[%s129 + $0x8] sm:$0xff]
        %v140 = vld [vmem:[%s129 + $0x10] sm:$0xff]
        %v141 = vld [vmem:[%s129 + $0x18] sm:$0xff]
        %v142 = vld [vmem:[%s129 + $0x20] sm:$0xff]
        %v143 = vld [vmem:[%s129 + $0x28] sm:$0xff]
        %v144 = vld [vmem:[%s129 + $0x30] sm:$0xff]
        %v145 = vld [vmem:[%s129 + $0x38] sm:$0xff]
        %v146 = vld [vmem:[#allocation2] sm:$0x1]
        %vm147 = vcmask 261120
        %v148 = vsel %vm147, %v138, 0.0
        %v149 = vsel %vm147, %v139, 0.0
        %v150 = vadd.f32 %v148, %v149
        %v151 = vsel %vm147, %v140, 0.0
        %v152 = vadd.f32 %v150, %v151
        %v153 = vsel %vm147, %v141, 0.0
        %v154 = vadd.f32 %v152, %v153
        %v155 = vsel %vm147, %v142, 0.0
        %v156 = vadd.f32 %v154, %v155
        %v157 = vsel %vm147, %v143, 0.0
        %v158 = vadd.f32 %v156, %v157
        %v159 = vsel %vm147, %v144, 0.0
        %v160 = vadd.f32 %v158, %v159
        %v161 = vsel %vm147, %v145, 0.0
        %v162 = vadd.f32 %v160, %v161
        %v163 = vrot.slane %v162, 4
        %v164 = vadd.f32 %v162, %v163
        %v165 = vrot.slane %v164, 2
        %v166 = vadd.f32 %v164, %v165
        %v167 = vrot.slane %v166, 1
        %v168 = vadd.f32 %v166, %v167
        %v169 = vadd.f32 %v146, %v168
        %vm170 = vcmask 253952
        %171 = vst.msk [vmem:[#allocation2] sm:$0x1] %vm170, %v169
        %v172 = vld [vmem:[#allocation3] sm:$0x1]
        %v173 = vmul.f32 %v138, %v138
        %v174 = vmul.f32 %v139, %v139
        %v175 = vmul.f32 %v140, %v140
        %v176 = vmul.f32 %v141, %v141
        %v177 = vmul.f32 %v142, %v142
        %v178 = vmul.f32 %v143, %v143
        %v179 = vmul.f32 %v144, %v144
        %v180 = vmul.f32 %v145, %v145
        %v181 = vsel %vm147, %v173, 0.0
        %v182 = vsel %vm147, %v174, 0.0
        %v183 = vadd.f32 %v181, %v182
        %v184 = vsel %vm147, %v175, 0.0
        %v185 = vadd.f32 %v183, %v184
        %v186 = vsel %vm147, %v176, 0.0
        %v187 = vadd.f32 %v185, %v186
        %v188 = vsel %vm147, %v177, 0.0
        %v189 = vadd.f32 %v187, %v188
        %v190 = vsel %vm147, %v178, 0.0
        %v191 = vadd.f32 %v189, %v190
        %v192 = vsel %vm147, %v179, 0.0
        %v193 = vadd.f32 %v191, %v192
        %v194 = vsel %vm147, %v180, 0.0
        %v195 = vadd.f32 %v193, %v194
        %v196 = vrot.slane %v195, 4
        %v197 = vadd.f32 %v195, %v196
        %v198 = vrot.slane %v197, 2
        %v199 = vadd.f32 %v197, %v198
        %v200 = vrot.slane %v199, 1
        %v201 = vadd.f32 %v199, %v200
        %v202 = vadd.f32 %v172, %v201
        %203 = vst.msk [vmem:[#allocation3] sm:$0x1] %vm170, %v202
        %p204 = scmp.eq.s32.totalorder %s16, 3
        // Predicated region
        $region29: #{tpu_custom_call.1} parent=23 // pred_check
          %p205 = pneg %p204
        $region30: #{tpu_custom_call.1} parent=23 // pred_check_branch
          %207 = sbr.rel (%p205) target = $region32
        $region31: #{tpu_custom_call.1} parent=23 // pred_region
          %v208 = vld [vmem:[#allocation2] sm:$0x1]
          %v209 = vsel %vm170, %v208, 0.0
          %210 = vadd.xlane.f32.xlu0 %v209
          %v211 = vpop.xlane.xlu0 %210
          %v212 = vrot.slane %v211, 4
          %v213 = vadd.f32 %v211, %v212
          %v214 = vrot.slane %v213, 2
          %v215 = vadd.f32 %v213, %v214
          %v216 = vrot.slane %v215, 1
          %v217 = vadd.f32 %v215, %v216
          %s218 = vtos %v217
          %v219 = vstv %s218
          %v220 = vld [vmem:[#allocation3] sm:$0x1]
          %v221 = vsel %vm170, %v220, 0.0
          %222 = vadd.xlane.f32.xlu0 %v221
          %v223 = vpop.xlane.xlu0 %222
          %v224 = vrot.slane %v223, 4
          %v225 = vadd.f32 %v223, %v224
          %v226 = vrot.slane %v225, 2
          %v227 = vadd.f32 %v225, %v226
          %v228 = vrot.slane %v227, 1
          %v229 = vadd.f32 %v227, %v228
          %s230 = vtos %v229
          %v231 = vstv %s230
          %v232 = vmul.f32 %v219, 0.00015625
          %v233 = vmul.f32 %v232, 6400.0
          %v234 = vmul.f32 %v233, %v232
          %v235 = vsub.f32 %v231, %v234
          %v236 = vmul.f32 %v235, 0.00015627441
          %v237 = vmax.f32 %v236, 1e-12
          %v238 = vrsqrt.pop %v237
          %239 = vst.msk [vmem:[#allocation4] sm:$0x1] %vm170, %v232
          %240 = vst.msk [vmem:[#allocation6] sm:$0x1] %vm170, %v238
        $region32: #{tpu_custom_call.1} parent=23 // pred_fallthru
          _
        // Predicated region
        $region33: #{tpu_custom_call.1} parent=23 // pred_check
          %p241 = pneg %p55
        $region34: #{tpu_custom_call.1} parent=23 // pred_check_branch
          %243 = sbr.rel (%p241) target = $region36
        $region35: #{tpu_custom_call.1} parent=23 // pred_region
          %s245 = ssub.s32 16, 16
          %246 = vsyncadd [#allocation5], %s245
          %s248 = sshll.u32 [#allocation4], 4
          %s249 = int_to_ptr.vmem [resolvable:$true] %s248
          %251 = dma.vmem_to_hbm [thread:$0]  %s249, 16, %s1, [#allocation5]
        $region36: #{tpu_custom_call.1} parent=23 // pred_fallthru
          _
        // Predicated region
        $region37: #{tpu_custom_call.1} parent=23 // pred_check
          %p252 = pneg %p76
        $region38: #{tpu_custom_call.1} parent=23 // pred_check_branch
          %254 = sbr.rel (%p252) target = $region40
        $region39: #{tpu_custom_call.1} parent=23 // pred_region
          %s256 = ssub.s32 16, 16
          %257 = vsyncadd [#allocation7], %s256
          %s259 = sshll.u32 [#allocation6], 4
          %s260 = int_to_ptr.vmem [resolvable:$true] %s259
          %262 = dma.vmem_to_hbm [thread:$0]  %s260, 16, %s2, [#allocation7]
        $region40: #{tpu_custom_call.1} parent=23 // pred_fallthru
          _
        // Predicated region
        $region41: #{tpu_custom_call.1} parent=23 // pred_check
          %p263 = pneg %p55
        $region42: #{tpu_custom_call.1} parent=23 // pred_check_branch
          %265 = sbr.rel (%p263) target = $region44
        $region43: #{tpu_custom_call.1} parent=23 // pred_region
          %266 = dma.done [#allocation5], 16
        $region44: #{tpu_custom_call.1} parent=23 // pred_fallthru
          _
        // Predicated region
        $region45: #{tpu_custom_call.1} parent=23 // pred_check
          %p267 = pneg %p76
        $region46: #{tpu_custom_call.1} parent=23 // pred_check_branch
          %269 = sbr.rel (%p267) target = $region48
        $region47: #{tpu_custom_call.1} parent=23 // pred_region
          %270 = dma.done [#allocation7], 16
        $region48: #{tpu_custom_call.1} parent=23 // pred_fallthru
          _
      $region24: #{tpu_custom_call.1} parent=5 // pred_fallthru
        _
      %p271 = scmp.le.s32.totalorder 2, %s11
      // Predicated region
      $region49: #{tpu_custom_call.1} parent=5 // pred_check
        %p272 = pneg %p271
      $region50: #{tpu_custom_call.1} parent=5 // pred_check_branch
        %274 = sbr.rel (%p272) target = $region52
      $region51: #{tpu_custom_call.1} parent=5 // pred_region
        %s275 = ssub.s32 %s11, 2
      $region52: #{tpu_custom_call.1} parent=5 // pred_fallthru
        _
    $region6: #{tpu_custom_call.1} parent=1 // loop_footer
      %s15 = sadd.s32 1, %s11
    $region7: #{tpu_custom_call.1} parent=1 // loop_footer_branch
      %10 = sbr.rel target = $region3
    $region8: #{tpu_custom_call.1} parent=1 // loop_exit
      _
    %276 = vsyncpa [#allocation5], 1
    %s277 = scalar_lea.sflag [#allocation5], 1
    %278 = vsyncpa %s277, 1
    %279 = vsyncpa [#allocation7], 1

</llo_original>
